<compile_context>
chip_gen: v6e
topology: v6e:2x2x1
jax: 0.10.0
libtpu: 0.0.40
codegen_flags: <defaults>
</compile_context>

<pallas_src>
import jax
import jax.numpy as jnp
from jax.experimental import pallas as pl
from jax.experimental.pallas import tpu as pltpu

IGNORE_INDEX = -1
SMOOTH = 1.0            # jaccard smoothing
LANE = 128              # TPU lane width
DEFAULT_ROWS = 1024     # 1024 rows x 128 lanes = 128K pixels per grid step
VMEM_BUDGET = 12 << 20  # soft cap for double-buffered input blocks

CE_COEF = 0.3
FORE_JAC_COEF = 0.2
BORDER_JAC_COEF = 0.2
FOCAL_COEF = 0.3


def _make_kernel(rows, tiles_per_split, r_valid, needs_mask):
    """Build the kernel for a given row-tile size.

    Accumulator slots (acc_ref[k], each (8, LANE) f32; signs flipped in JAX):
      0: log p_t * valid             (CE numerator, negated later)
      1: valid                       (pixel count)
      2: (1-p_t)^2 * log p_t * valid (focal numerator, negated later)
      3: p_1 * [t==1]   4: p_1 * valid   5: [t==1]
      6: p_2 * [t==2]   7: p_2 * valid   8: [t==2]
    """

    def kernel(x_ref, t_ref, out_ref, acc_ref):
        i = pl.program_id(2)

        @pl.when(i == 0)
        def _init():
            acc_ref[...] = jnp.zeros_like(acc_ref)

        # dense per-class (rows, 128) planes; cast is a free VPU op (bf16 OK)
        x0 = x_ref[0, 0].astype(jnp.float32)
        x1 = x_ref[0, 1].astype(jnp.float32)
        x2 = x_ref[0, 2].astype(jnp.float32)
        t = t_ref[0]
        if t.dtype != jnp.int32:
            t = t.astype(jnp.int32)   # int8 targets: 4x less HBM target traffic

        valid = t != IGNORE_INDEX

        if needs_mask:
            # only emitted when a tile can overrun the real row extent:
            # garbage rows could hold NaN/Inf -> must zero logits, not just valid
            gt = pl.program_id(1) * tiles_per_split + i
            row = jax.lax.broadcasted_iota(jnp.int32, (rows, LANE), 0)
            inb = (gt * rows + row) < r_valid
            zero = jnp.zeros_like(x0)
            x0 = jnp.where(inb, x0, zero)
            x1 = jnp.where(inb, x1, zero)
            x2 = jnp.where(inb, x2, zero)
            valid = jnp.logical_and(valid, inb)

        # numerically stable softmax over the 3 classes (VPU + EUP only)
        m = jnp.maximum(jnp.maximum(x0, x1), x2)
        e0 = jnp.exp(x0 - m)
        e1 = jnp.exp(x1 - m)
        e2 = jnp.exp(x2 - m)
        s = e0 + e1 + e2
        r = pl.reciprocal(s, approx=True)     # EUP slot (has slack)
        inv_s = r * (2.0 - s * r)             # one Newton step: ~f32-accurate
        log_s = jnp.log(s)

        # target-class gather via selects (no iota / one-hot / sublane reduce)
        is1 = t == 1
        is2 = t == 2
        xt = jnp.where(is2, x2, jnp.where(is1, x1, x0))
        et = jnp.where(is2, e2, jnp.where(is1, e1, e0))

        validf = valid.astype(jnp.float32)
        t1f = jnp.where(is1, validf, 0.0)
        t2f = jnp.where(is2, validf, 0.0)

        p_t = et * inv_s
        logp_t = (xt - m) - log_s
        lp_v = logp_t * validf                # negated in the JAX combine
        omp = 1.0 - p_t
        focal_v = omp * omp * lp_v            # negated in the JAX combine
        p1 = e1 * inv_s
        p2 = e2 * inv_s

        def fold(plane):
            # (rows,128) -> (8,128): rows//8 vreg-to-vreg adds, no XLU, no
            # full-tile accumulator read-modify-write (frees the vst slot).
            return plane.reshape(rows // 8, 8, LANE).sum(axis=0)

        acc_ref[0] += fold(lp_v)
        acc_ref[1] += fold(validf)
        acc_ref[2] += fold(focal_v)
        acc_ref[3] += fold(p1 * t1f)
        acc_ref[4] += fold(p1 * validf)
        acc_ref[5] += fold(t1f)
        acc_ref[6] += fold(p2 * t2f)
        acc_ref[7] += fold(p2 * validf)
        acc_ref[8] += fold(t2f)

        # one small cross-sublane reduction + lane-dense store per (image,split)
        @pl.when(i == pl.num_programs(2) - 1)
        def _finalize():
            out_ref[0, 0] = jnp.sum(acc_ref[...], axis=1)

    return kernel


def hybrid3chan_loss(logits_nchw, targets_nhw, rows_per_tile=DEFAULT_ROWS):
    """logits_nchw: (N, 3, H, W) float (f32 or bf16); targets_nhw: (N, H, W)
    integer (ignore_index = -1; int8 targets cut target HBM traffic 4x)."""
    N, C, H, W = logits_nchw.shape
    assert C == 3, "Hybrid3ChanLoss kernel assumes 3 channels"
    HW = H * W

    # pure reshapes only; keep source dtypes (no extra HBM pass)
    x = logits_nchw.reshape(N, C, HW)
    t = targets_nhw.reshape(N, HW)

    if HW % LANE:
        # TODO(synk): rare path (H*W not lane aligned) pays one pad copy.
        pad = LANE - (HW % LANE)
        x = jnp.pad(x, ((0, 0), (0, 0), (0, pad)))
        t = jnp.pad(t, ((0, 0), (0, pad)), constant_values=IGNORE_INDEX)

    R = x.shape[-1] // LANE
    x = x.reshape(N, C, R, LANE)
    t = t.reshape(N, R, LANE)

    # dtype-aware row granularity: keeps every input on its native tile
    # (f32/i32 -> (8,128), bf16 -> (16,128), int8 -> (32,128))
    g = 8
    if x.dtype.itemsize == 2:
        g = 16
    if t.dtype.itemsize == 1:
        g = max(g, 32)
    elif t.dtype.itemsize == 2:
        g = max(g, 16)

    # largest native-tile multiple of rows that fits the VMEM budget
    # (double-buffered logits + targets blocks; 36 KiB scratch is negligible)
    bytes_per_row = LANE * (C * x.dtype.itemsize + t.dtype.itemsize) * 2
    max_rows_vmem = max(g, (VMEM_BUDGET // bytes_per_row // g) * g)
    cap = max(g, min((rows_per_tile // g) * g, max_rows_vmem))

    if R >= cap:
        rows = cap                        # ragged tail (if any) masked in-kernel
    else:
        if R % 8:
            # tiny-input path: pad rows so the in-register (rows//8) fold works;
            # padded logits are 0 and targets IGNORE -> contribute nothing
            pad_r = 8 - (R % 8)
            x = jnp.pad(x, ((0, 0), (0, 0), (0, pad_r), (0, 0)))
            t = jnp.pad(t, ((0, 0), (0, pad_r), (0, 0)),
                        constant_values=IGNORE_INDEX)
            R += pad_r
        rows = R                          # single tile; block == full dim is legal

    n_tiles = pl.cdiv(R, rows)
    # split the tile axis 2-way when it divides evenly so v7x's two TensorCores
    # both get work even at batch size 1 (harmless size-1 axis otherwise)
    split = 2 if (n_tiles >= 2 and n_tiles % 2 == 0) else 1
    tps = n_tiles // split
    needs_mask = (n_tiles * rows) != R

    kernel = _make_kernel(rows, tps, R, needs_mask)

    partial = pl.pallas_call(
        kernel,
        out_shape=jax.ShapeDtypeStruct((N, split, 9, LANE), jnp.float32),
        grid_spec=pltpu.PrefetchScalarGridSpec(
            num_scalar_prefetch=0,
            grid=(N, split, tps),
            in_specs=[
                pl.BlockSpec((1, C, rows, LANE),
                             lambda n, s, i: (n, 0, s * tps + i, 0)),
                pl.BlockSpec((1, rows, LANE),
                             lambda n, s, i: (n, s * tps + i, 0)),
            ],
            out_specs=pl.BlockSpec((1, 1, 9, LANE),
                                   lambda n, s, i: (n, s, 0, 0)),
            scratch_shapes=[pltpu.VMEM((9, 8, LANE), jnp.float32)],
        ),
        compiler_params=pltpu.CompilerParams(
            dimension_semantics=("parallel", "parallel", "arbitrary")),
    )(x, t)

    # final tiny combine in plain JAX (signs of CE / focal flipped here)
    ssum = jnp.sum(partial, axis=(0, 1, 3))                  # (9,)
    ce = -ssum[0] / ssum[1]
    focal = -ssum[2] / ssum[1]
    jac1 = 1.0 - (ssum[3] + SMOOTH) / (ssum[4] + ssum[5] - ssum[3] + SMOOTH)
    jac2 = 1.0 - (ssum[6] + SMOOTH) / (ssum[7] + ssum[8] - ssum[6] + SMOOTH)
    return (CE_COEF * ce + FORE_JAC_COEF * jac1
            + BORDER_JAC_COEF * jac2 + FOCAL_COEF * focal)


def _reference_loss(logits, targets):
    """Pure-JAX reference (same semantics) for correctness check."""
    x = logits.astype(jnp.float32)
    targets = targets.astype(jnp.int32)
    logp = jax.nn.log_softmax(x, axis=1)
    p = jnp.exp(logp)
    valid = targets != IGNORE_INDEX
    vf = valid.astype(jnp.float32)
    t_safe = jnp.where(valid, targets, 0)
    logp_t = jnp.take_along_axis(logp, t_safe[:, None], axis=1)[:, 0]
    p_t = jnp.take_along_axis(p, t_safe[:, None], axis=1)[:, 0]
    ce = jnp.sum(-logp_t * vf) / jnp.sum(vf)
    focal = jnp.sum(((1.0 - p_t) ** 2) * (-logp_t) * vf) / jnp.sum(vf)

    def jac(c):
        pc = p[:, c]
        tc = (targets == c).astype(jnp.float32) * vf
        inter = jnp.sum(pc * tc)
        union = jnp.sum(pc * vf) + jnp.sum(tc) - inter
        return 1.0 - (inter + SMOOTH) / (union + SMOOTH)

    return (CE_COEF * ce + FORE_JAC_COEF * jac(1)
            + BORDER_JAC_COEF * jac(2) + FOCAL_COEF * focal)


def _check(key, shape, rows_per_tile=DEFAULT_ROWS,
           logits_dtype=jnp.float32, target_dtype=jnp.int32):
    k1, k2 = jax.random.split(key)
    N, C, H, W = shape
    logits = jax.random.normal(k1, (N, C, H, W), dtype=jnp.float32)
    logits = logits.astype(logits_dtype)
    # targets in {-1, 0, 1, 2}: exercises ignore_index and both jaccard classes
    targets = jax.random.randint(k2, (N, H, W), -1, C, dtype=jnp.int32)
    targets = targets.astype(target_dtype)

    out = hybrid3chan_loss(logits, targets, rows_per_tile=rows_per_tile)
    out = jax.block_until_ready(out)
    ref = _reference_loss(logits, targets)
    assert abs(float(out) - float(ref)) < 1e-4, (shape, float(out), float(ref))


if __name__ == "__main__":
    key = jax.random.PRNGKey(0)
    k1, k2, k3, k4 = jax.random.split(key, 4)

    # single-tile path (R padded to 8 rows)
    _check(k1, (2, 3, 16, 16))
    # ragged tail + 2-way tile split: R=11, rows=8 -> masked last tile on s=1
    _check(k2, (2, 3, 16, 88), rows_per_tile=8)
    # HW not lane-aligned -> pad fallback path
    _check(k3, (2, 3, 10, 10))
    # reduced-byte path: bf16 logits + int8 targets on native (32,128) tiles,
    # 2 tiles split across the "parallel" axis (dual-TC layout on v7x)
    _check(k4, (2, 3, 64, 128), rows_per_tile=32,
           logits_dtype=jnp.bfloat16, target_dtype=jnp.int8)

    print("KERNEL_OK")
</pallas_src>

<mosaic_0001>
module attributes {stable_mosaic.version = 11 : i64} {
  func.func @kernel(%arg0: i32, %arg1: i32, %arg2: i32, %arg3: memref<1x3x8x128xf32, #tpu.memory_space<vmem>>, %arg4: memref<1x8x128xi32, #tpu.memory_space<vmem>>, %arg5: memref<1x1x9x128xf32, #tpu.memory_space<vmem>>, %arg6: memref<9x8x128xf32, #tpu.memory_space<vmem>>) attributes {dimension_semantics = [#tpu.dimension_semantics<parallel>, #tpu.dimension_semantics<parallel>, #tpu.dimension_semantics<arbitrary>], iteration_bounds = array<i64: 2, 1, 1>, scalar_prefetch = 0 : i64, scratch_operands = 1 : i64, tpu.core_type = #tpu.core_type<tc>, window_params = [{transform_indices = @transform_0, window_bounds = array<i64: 1, 3, 8, 128>}, {transform_indices = @transform_1, window_bounds = array<i64: 1, 8, 128>}, {transform_indices = @transform_2, window_bounds = array<i64: 1, 1, 9, 128>}]} {
    %c0_i32 = arith.constant 0 : i32
    %0 = arith.cmpi eq, %arg2, %c0_i32 : i32
    %1 = arith.extui %0 : i1 to i32
    %c0_i32_0 = arith.constant 0 : i32
    %2 = arith.cmpi ne, %1, %c0_i32_0 : i32
    scf.if %2 {
      %cst_75 = arith.constant 0.000000e+00 : f32
      %132 = vector.broadcast %cst_75 : f32 to vector<9x8x128xf32>
      %c0_76 = arith.constant 0 : index
      %c0_77 = arith.constant 0 : index
      %c0_78 = arith.constant 0 : index
      %133 = vector.load %arg6[%c0_76, %c0_77, %c0_78] : memref<9x8x128xf32, #tpu.memory_space<vmem>>, vector<9x8x128xf32>
      tpu.vector_store %arg6[%c0_76, %c0_77, %c0_78], %132 {strides = array<i32>} : memref<9x8x128xf32, #tpu.memory_space<vmem>>, vector<9x8x128xf32>,
    } else {
    }
    %c0 = arith.constant 0 : index
    %c0_1 = arith.constant 0 : index
    %c0_2 = arith.constant 0 : index
    %c0_3 = arith.constant 0 : index
    %3 = vector.load %arg3[%c0, %c0_1, %c0_2, %c0_3] : memref<1x3x8x128xf32, #tpu.memory_space<vmem>>, vector<1x1x8x128xf32>
    %4 = vector.shape_cast %3 : vector<1x1x8x128xf32> to vector<8x128xf32>
    %c0_4 = arith.constant 0 : index
    %c1 = arith.constant 1 : index
    %c0_5 = arith.constant 0 : index
    %c0_6 = arith.constant 0 : index
    %5 = vector.load %arg3[%c0_4, %c1, %c0_5, %c0_6] : memref<1x3x8x128xf32, #tpu.memory_space<vmem>>, vector<1x1x8x128xf32>
    %6 = vector.shape_cast %5 : vector<1x1x8x128xf32> to vector<8x128xf32>
    %c0_7 = arith.constant 0 : index
    %c2 = arith.constant 2 : index
    %c0_8 = arith.constant 0 : index
    %c0_9 = arith.constant 0 : index
    %7 = vector.load %arg3[%c0_7, %c2, %c0_8, %c0_9] : memref<1x3x8x128xf32, #tpu.memory_space<vmem>>, vector<1x1x8x128xf32>
    %8 = vector.shape_cast %7 : vector<1x1x8x128xf32> to vector<8x128xf32>
    %c0_10 = arith.constant 0 : index
    %c0_11 = arith.constant 0 : index
    %c0_12 = arith.constant 0 : index
    %9 = vector.load %arg4[%c0_10, %c0_11, %c0_12] : memref<1x8x128xi32, #tpu.memory_space<vmem>>, vector<1x8x128xi32>
    %10 = vector.shape_cast %9 : vector<1x8x128xi32> to vector<8x128xi32>
    %c-1_i32 = arith.constant -1 : i32
    %11 = vector.broadcast %c-1_i32 : i32 to vector<8x128xi32>
    %12 = arith.cmpi ne, %10, %11 : vector<8x128xi32>
    %13 = arith.maximumf %4, %6 : vector<8x128xf32>
    %14 = arith.maximumf %13, %8 : vector<8x128xf32>
    %15 = arith.subf %4, %14 : vector<8x128xf32>
    %16 = math.exp %15 : vector<8x128xf32>
    %17 = arith.subf %6, %14 : vector<8x128xf32>
    %18 = math.exp %17 : vector<8x128xf32>
    %19 = arith.subf %8, %14 : vector<8x128xf32>
    %20 = math.exp %19 : vector<8x128xf32>
    %21 = arith.addf %16, %18 : vector<8x128xf32>
    %22 = arith.addf %21, %20 : vector<8x128xf32>
    %23 = tpu.reciprocal %22 {approx = true} : vector<8x128xf32> -> vector<8x128xf32>
    %24 = arith.mulf %22, %23 : vector<8x128xf32>
    %cst = arith.constant 2.000000e+00 : f32
    %25 = vector.broadcast %cst : f32 to vector<8x128xf32>
    %26 = arith.subf %25, %24 : vector<8x128xf32>
    %27 = arith.mulf %23, %26 : vector<8x128xf32>
    %28 = math.log %22 : vector<8x128xf32>
    %c1_i32 = arith.constant 1 : i32
    %29 = vector.broadcast %c1_i32 : i32 to vector<8x128xi32>
    %30 = arith.cmpi eq, %10, %29 : vector<8x128xi32>
    %c2_i32 = arith.constant 2 : i32
    %31 = vector.broadcast %c2_i32 : i32 to vector<8x128xi32>
    %32 = arith.cmpi eq, %10, %31 : vector<8x128xi32>
    %33 = arith.select %30, %6, %4 : vector<8x128xi1>, vector<8x128xf32>
    %34 = arith.select %32, %8, %33 : vector<8x128xi1>, vector<8x128xf32>
    %35 = arith.select %30, %18, %16 : vector<8x128xi1>, vector<8x128xf32>
    %36 = arith.select %32, %20, %35 : vector<8x128xi1>, vector<8x128xf32>
    %37 = arith.extui %12 : vector<8x128xi1> to vector<8x128xi32>
    %38 = arith.sitofp %37 : vector<8x128xi32> to vector<8x128xf32>
    %cst_13 = arith.constant 0.000000e+00 : f32
    %39 = vector.broadcast %cst_13 : f32 to vector<8x128xf32>
    %40 = arith.select %30, %38, %39 : vector<8x128xi1>, vector<8x128xf32>
    %cst_14 = arith.constant 0.000000e+00 : f32
    %41 = vector.broadcast %cst_14 : f32 to vector<8x128xf32>
    %42 = arith.select %32, %38, %41 : vector<8x128xi1>, vector<8x128xf32>
    %43 = arith.mulf %36, %27 : vector<8x128xf32>
    %44 = arith.subf %34, %14 : vector<8x128xf32>
    %45 = arith.subf %44, %28 : vector<8x128xf32>
    %46 = arith.mulf %45, %38 : vector<8x128xf32>
    %cst_15 = arith.constant 1.000000e+00 : f32
    %47 = vector.broadcast %cst_15 : f32 to vector<8x128xf32>
    %48 = arith.subf %47, %43 : vector<8x128xf32>
    %49 = arith.mulf %48, %48 : vector<8x128xf32>
    %50 = arith.mulf %49, %46 : vector<8x128xf32>
    %51 = arith.mulf %18, %27 : vector<8x128xf32>
    %52 = arith.mulf %20, %27 : vector<8x128xf32>
    %c0_16 = arith.constant 0 : index
    %c0_17 = arith.constant 0 : index
    %c0_18 = arith.constant 0 : index
    %53 = vector.load %arg6[%c0_16, %c0_17, %c0_18] : memref<9x8x128xf32, #tpu.memory_space<vmem>>, vector<1x8x128xf32>
    %54 = vector.shape_cast %53 : vector<1x8x128xf32> to vector<8x128xf32>
    %55 = vector.shape_cast %46 : vector<8x128xf32> to vector<1x8x128xf32>
    %cst_19 = arith.constant dense<0.000000e+00> : vector<8x128xf32>
    %56 = vector.multi_reduction <add>, %55, %cst_19 [0] : vector<1x8x128xf32> to vector<8x128xf32>
    %57 = arith.addf %54, %56 : vector<8x128xf32>
    %c0_20 = arith.constant 0 : index
    %c0_21 = arith.constant 0 : index
    %c0_22 = arith.constant 0 : index
    %58 = vector.load %arg6[%c0_20, %c0_21, %c0_22] : memref<9x8x128xf32, #tpu.memory_space<vmem>>, vector<1x8x128xf32>
    %59 = vector.shape_cast %58 : vector<1x8x128xf32> to vector<8x128xf32>
    %60 = vector.shape_cast %57 : vector<8x128xf32> to vector<1x8x128xf32>
    tpu.vector_store %arg6[%c0_20, %c0_21, %c0_22], %60 {strides = array<i32>} : memref<9x8x128xf32, #tpu.memory_space<vmem>>, vector<1x8x128xf32>,
    %c1_23 = arith.constant 1 : index
    %c0_24 = arith.constant 0 : index
    %c0_25 = arith.constant 0 : index
    %61 = vector.load %arg6[%c1_23, %c0_24, %c0_25] : memref<9x8x128xf32, #tpu.memory_space<vmem>>, vector<1x8x128xf32>
    %62 = vector.shape_cast %61 : vector<1x8x128xf32> to vector<8x128xf32>
    %63 = vector.shape_cast %38 : vector<8x128xf32> to vector<1x8x128xf32>
    %cst_26 = arith.constant dense<0.000000e+00> : vector<8x128xf32>
    %64 = vector.multi_reduction <add>, %63, %cst_26 [0] : vector<1x8x128xf32> to vector<8x128xf32>
    %65 = arith.addf %62, %64 : vector<8x128xf32>
    %c1_27 = arith.constant 1 : index
    %c0_28 = arith.constant 0 : index
    %c0_29 = arith.constant 0 : index
    %66 = vector.load %arg6[%c1_27, %c0_28, %c0_29] : memref<9x8x128xf32, #tpu.memory_space<vmem>>, vector<1x8x128xf32>
    %67 = vector.shape_cast %66 : vector<1x8x128xf32> to vector<8x128xf32>
    %68 = vector.shape_cast %65 : vector<8x128xf32> to vector<1x8x128xf32>
    tpu.vector_store %arg6[%c1_27, %c0_28, %c0_29], %68 {strides = array<i32>} : memref<9x8x128xf32, #tpu.memory_space<vmem>>, vector<1x8x128xf32>,
    %c2_30 = arith.constant 2 : index
    %c0_31 = arith.constant 0 : index
    %c0_32 = arith.constant 0 : index
    %69 = vector.load %arg6[%c2_30, %c0_31, %c0_32] : memref<9x8x128xf32, #tpu.memory_space<vmem>>, vector<1x8x128xf32>
    %70 = vector.shape_cast %69 : vector<1x8x128xf32> to vector<8x128xf32>
    %71 = vector.shape_cast %50 : vector<8x128xf32> to vector<1x8x128xf32>
    %cst_33 = arith.constant dense<0.000000e+00> : vector<8x128xf32>
    %72 = vector.multi_reduction <add>, %71, %cst_33 [0] : vector<1x8x128xf32> to vector<8x128xf32>
    %73 = arith.addf %70, %72 : vector<8x128xf32>
    %c2_34 = arith.constant 2 : index
    %c0_35 = arith.constant 0 : index
    %c0_36 = arith.constant 0 : index
    %74 = vector.load %arg6[%c2_34, %c0_35, %c0_36] : memref<9x8x128xf32, #tpu.memory_space<vmem>>, vector<1x8x128xf32>
    %75 = vector.shape_cast %74 : vector<1x8x128xf32> to vector<8x128xf32>
    %76 = vector.shape_cast %73 : vector<8x128xf32> to vector<1x8x128xf32>
    tpu.vector_store %arg6[%c2_34, %c0_35, %c0_36], %76 {strides = array<i32>} : memref<9x8x128xf32, #tpu.memory_space<vmem>>, vector<1x8x128xf32>,
    %c3 = arith.constant 3 : index
    %c0_37 = arith.constant 0 : index
    %c0_38 = arith.constant 0 : index
    %77 = vector.load %arg6[%c3, %c0_37, %c0_38] : memref<9x8x128xf32, #tpu.memory_space<vmem>>, vector<1x8x128xf32>
    %78 = vector.shape_cast %77 : vector<1x8x128xf32> to vector<8x128xf32>
    %79 = arith.mulf %51, %40 : vector<8x128xf32>
    %80 = vector.shape_cast %79 : vector<8x128xf32> to vector<1x8x128xf32>
    %cst_39 = arith.constant dense<0.000000e+00> : vector<8x128xf32>
    %81 = vector.multi_reduction <add>, %80, %cst_39 [0] : vector<1x8x128xf32> to vector<8x128xf32>
    %82 = arith.addf %78, %81 : vector<8x128xf32>
    %c3_40 = arith.constant 3 : index
    %c0_41 = arith.constant 0 : index
    %c0_42 = arith.constant 0 : index
    %83 = vector.load %arg6[%c3_40, %c0_41, %c0_42] : memref<9x8x128xf32, #tpu.memory_space<vmem>>, vector<1x8x128xf32>
    %84 = vector.shape_cast %83 : vector<1x8x128xf32> to vector<8x128xf32>
    %85 = vector.shape_cast %82 : vector<8x128xf32> to vector<1x8x128xf32>
    tpu.vector_store %arg6[%c3_40, %c0_41, %c0_42], %85 {strides = array<i32>} : memref<9x8x128xf32, #tpu.memory_space<vmem>>, vector<1x8x128xf32>,
    %c4 = arith.constant 4 : index
    %c0_43 = arith.constant 0 : index
    %c0_44 = arith.constant 0 : index
    %86 = vector.load %arg6[%c4, %c0_43, %c0_44] : memref<9x8x128xf32, #tpu.memory_space<vmem>>, vector<1x8x128xf32>
    %87 = vector.shape_cast %86 : vector<1x8x128xf32> to vector<8x128xf32>
    %88 = arith.mulf %51, %38 : vector<8x128xf32>
    %89 = vector.shape_cast %88 : vector<8x128xf32> to vector<1x8x128xf32>
    %cst_45 = arith.constant dense<0.000000e+00> : vector<8x128xf32>
    %90 = vector.multi_reduction <add>, %89, %cst_45 [0] : vector<1x8x128xf32> to vector<8x128xf32>
    %91 = arith.addf %87, %90 : vector<8x128xf32>
    %c4_46 = arith.constant 4 : index
    %c0_47 = arith.constant 0 : index
    %c0_48 = arith.constant 0 : index
    %92 = vector.load %arg6[%c4_46, %c0_47, %c0_48] : memref<9x8x128xf32, #tpu.memory_space<vmem>>, vector<1x8x128xf32>
    %93 = vector.shape_cast %92 : vector<1x8x128xf32> to vector<8x128xf32>
    %94 = vector.shape_cast %91 : vector<8x128xf32> to vector<1x8x128xf32>
    tpu.vector_store %arg6[%c4_46, %c0_47, %c0_48], %94 {strides = array<i32>} : memref<9x8x128xf32, #tpu.memory_space<vmem>>, vector<1x8x128xf32>,
    %c5 = arith.constant 5 : index
    %c0_49 = arith.constant 0 : index
    %c0_50 = arith.constant 0 : index
    %95 = vector.load %arg6[%c5, %c0_49, %c0_50] : memref<9x8x128xf32, #tpu.memory_space<vmem>>, vector<1x8x128xf32>
    %96 = vector.shape_cast %95 : vector<1x8x128xf32> to vector<8x128xf32>
    %97 = vector.shape_cast %40 : vector<8x128xf32> to vector<1x8x128xf32>
    %cst_51 = arith.constant dense<0.000000e+00> : vector<8x128xf32>
    %98 = vector.multi_reduction <add>, %97, %cst_51 [0] : vector<1x8x128xf32> to vector<8x128xf32>
    %99 = arith.addf %96, %98 : vector<8x128xf32>
    %c5_52 = arith.constant 5 : index
    %c0_53 = arith.constant 0 : index
    %c0_54 = arith.constant 0 : index
    %100 = vector.load %arg6[%c5_52, %c0_53, %c0_54] : memref<9x8x128xf32, #tpu.memory_space<vmem>>, vector<1x8x128xf32>
    %101 = vector.shape_cast %100 : vector<1x8x128xf32> to vector<8x128xf32>
    %102 = vector.shape_cast %99 : vector<8x128xf32> to vector<1x8x128xf32>
    tpu.vector_store %arg6[%c5_52, %c0_53, %c0_54], %102 {strides = array<i32>} : memref<9x8x128xf32, #tpu.memory_space<vmem>>, vector<1x8x128xf32>,
    %c6 = arith.constant 6 : index
    %c0_55 = arith.constant 0 : index
    %c0_56 = arith.constant 0 : index
    %103 = vector.load %arg6[%c6, %c0_55, %c0_56] : memref<9x8x128xf32, #tpu.memory_space<vmem>>, vector<1x8x128xf32>
    %104 = vector.shape_cast %103 : vector<1x8x128xf32> to vector<8x128xf32>
    %105 = arith.mulf %52, %42 : vector<8x128xf32>
    %106 = vector.shape_cast %105 : vector<8x128xf32> to vector<1x8x128xf32>
    %cst_57 = arith.constant dense<0.000000e+00> : vector<8x128xf32>
    %107 = vector.multi_reduction <add>, %106, %cst_57 [0] : vector<1x8x128xf32> to vector<8x128xf32>
    %108 = arith.addf %104, %107 : vector<8x128xf32>
    %c6_58 = arith.constant 6 : index
    %c0_59 = arith.constant 0 : index
    %c0_60 = arith.constant 0 : index
    %109 = vector.load %arg6[%c6_58, %c0_59, %c0_60] : memref<9x8x128xf32, #tpu.memory_space<vmem>>, vector<1x8x128xf32>
    %110 = vector.shape_cast %109 : vector<1x8x128xf32> to vector<8x128xf32>
    %111 = vector.shape_cast %108 : vector<8x128xf32> to vector<1x8x128xf32>
    tpu.vector_store %arg6[%c6_58, %c0_59, %c0_60], %111 {strides = array<i32>} : memref<9x8x128xf32, #tpu.memory_space<vmem>>, vector<1x8x128xf32>,
    %c7 = arith.constant 7 : index
    %c0_61 = arith.constant 0 : index
    %c0_62 = arith.constant 0 : index
    %112 = vector.load %arg6[%c7, %c0_61, %c0_62] : memref<9x8x128xf32, #tpu.memory_space<vmem>>, vector<1x8x128xf32>
    %113 = vector.shape_cast %112 : vector<1x8x128xf32> to vector<8x128xf32>
    %114 = arith.mulf %52, %38 : vector<8x128xf32>
    %115 = vector.shape_cast %114 : vector<8x128xf32> to vector<1x8x128xf32>
    %cst_63 = arith.constant dense<0.000000e+00> : vector<8x128xf32>
    %116 = vector.multi_reduction <add>, %115, %cst_63 [0] : vector<1x8x128xf32> to vector<8x128xf32>
    %117 = arith.addf %113, %116 : vector<8x128xf32>
    %c7_64 = arith.constant 7 : index
    %c0_65 = arith.constant 0 : index
    %c0_66 = arith.constant 0 : index
    %118 = vector.load %arg6[%c7_64, %c0_65, %c0_66] : memref<9x8x128xf32, #tpu.memory_space<vmem>>, vector<1x8x128xf32>
    %119 = vector.shape_cast %118 : vector<1x8x128xf32> to vector<8x128xf32>
    %120 = vector.shape_cast %117 : vector<8x128xf32> to vector<1x8x128xf32>
    tpu.vector_store %arg6[%c7_64, %c0_65, %c0_66], %120 {strides = array<i32>} : memref<9x8x128xf32, #tpu.memory_space<vmem>>, vector<1x8x128xf32>,
    %c8 = arith.constant 8 : index
    %c0_67 = arith.constant 0 : index
    %c0_68 = arith.constant 0 : index
    %121 = vector.load %arg6[%c8, %c0_67, %c0_68] : memref<9x8x128xf32, #tpu.memory_space<vmem>>, vector<1x8x128xf32>
    %122 = vector.shape_cast %121 : vector<1x8x128xf32> to vector<8x128xf32>
    %123 = vector.shape_cast %42 : vector<8x128xf32> to vector<1x8x128xf32>
    %cst_69 = arith.constant dense<0.000000e+00> : vector<8x128xf32>
    %124 = vector.multi_reduction <add>, %123, %cst_69 [0] : vector<1x8x128xf32> to vector<8x128xf32>
    %125 = arith.addf %122, %124 : vector<8x128xf32>
    %c8_70 = arith.constant 8 : index
    %c0_71 = arith.constant 0 : index
    %c0_72 = arith.constant 0 : index
    %126 = vector.load %arg6[%c8_70, %c0_71, %c0_72] : memref<9x8x128xf32, #tpu.memory_space<vmem>>, vector<1x8x128xf32>
    %127 = vector.shape_cast %126 : vector<1x8x128xf32> to vector<8x128xf32>
    %128 = vector.shape_cast %125 : vector<8x128xf32> to vector<1x8x128xf32>
    tpu.vector_store %arg6[%c8_70, %c0_71, %c0_72], %128 {strides = array<i32>} : memref<9x8x128xf32, #tpu.memory_space<vmem>>, vector<1x8x128xf32>,
    %c0_i32_73 = arith.constant 0 : i32
    %129 = arith.cmpi eq, %arg2, %c0_i32_73 : i32
    %130 = arith.extui %129 : i1 to i32
    %c0_i32_74 = arith.constant 0 : i32
    %131 = arith.cmpi ne, %130, %c0_i32_74 : i32
    scf.if %131 {
      %c0_75 = arith.constant 0 : index
      %c0_76 = arith.constant 0 : index
      %c0_77 = arith.constant 0 : index
      %132 = vector.load %arg6[%c0_75, %c0_76, %c0_77] : memref<9x8x128xf32, #tpu.memory_space<vmem>>, vector<9x8x128xf32>
      %cst_78 = arith.constant dense<0.000000e+00> : vector<9x128xf32>
      %133 = vector.multi_reduction <add>, %132, %cst_78 [1] : vector<9x8x128xf32> to vector<9x128xf32>
      %c0_79 = arith.constant 0 : index
      %c0_80 = arith.constant 0 : index
      %c0_81 = arith.constant 0 : index
      %c0_82 = arith.constant 0 : index
      %134 = vector.load %arg5[%c0_79, %c0_80, %c0_81, %c0_82] : memref<1x1x9x128xf32, #tpu.memory_space<vmem>>, vector<1x1x9x128xf32>
      %135 = vector.shape_cast %134 : vector<1x1x9x128xf32> to vector<9x128xf32>
      %136 = vector.shape_cast %133 : vector<9x128xf32> to vector<1x1x9x128xf32>
      tpu.vector_store %arg5[%c0_79, %c0_80, %c0_81, %c0_82], %136 {strides = array<i32>} : memref<1x1x9x128xf32, #tpu.memory_space<vmem>>, vector<1x1x9x128xf32>,
    } else {
    }
    return
  }
  func.func @transform_0(%arg0: i32, %arg1: i32, %arg2: i32) -> (i32, i32, i32, i32) {
    %c1_i32 = arith.constant 1 : i32
    %0 = arith.muli %arg1, %c1_i32 : i32
    %1 = arith.addi %0, %arg2 : i32
    %c0_i32 = arith.constant 0 : i32
    %c0_i32_0 = arith.constant 0 : i32
    %c0_i32_1 = arith.constant 0 : i32
    return %arg0, %c0_i32, %1, %c0_i32_0 : i32, i32, i32, i32
  }
  func.func @transform_1(%arg0: i32, %arg1: i32, %arg2: i32) -> (i32, i32, i32) {
    %c1_i32 = arith.constant 1 : i32
    %0 = arith.muli %arg1, %c1_i32 : i32
    %1 = arith.addi %0, %arg2 : i32
    %c0_i32 = arith.constant 0 : i32
    %c0_i32_0 = arith.constant 0 : i32
    return %arg0, %1, %c0_i32 : i32, i32, i32
  }
  func.func @transform_2(%arg0: i32, %arg1: i32, %arg2: i32) -> (i32, i32, i32, i32) {
    %c0_i32 = arith.constant 0 : i32
    %c0_i32_0 = arith.constant 0 : i32
    %c0_i32_1 = arith.constant 0 : i32
    return %arg0, %arg1, %c0_i32, %c0_i32_0 : i32, i32, i32, i32
  }
}

</mosaic_0001>

<llo_original>
// kernel: tpu_custom_call.1
$region0: #{tpu_custom_call.1}
  #allocation0 [shape = 'u32[]', space=smem, size = 0x4, offset = 0x4, fixed_abs, tag = 'smem constant byte address 0x4 - core index']
  #allocation1 [shape = 'u32[144,128]{1,0:T(1,128)}', space=vmem, size = 0x12000, scoped, tag = 'internal scratch']
  #allocation2 [shape = 'f32[9,8,128]{2,1,0:T(8,128)}', space=vmem, size = 0x9000, scoped, tag = 'scratch operand']
  %s0 = inlined_call_operand.hbm [shape: f32[2,3,8,128], index: 0, kind: input, shape index: {}]
  %s1 = inlined_call_operand.hbm [shape: s32[2,8,128], index: 1, kind: input, shape index: {}]
  %s2 = inlined_call_operand.vmem [shape: f32[2,1,9,128], index: 2, kind: output, shape index: {}]
  %s3 = sld [smem:[#allocation0]]
  $region57: #{tpu_custom_call.1} parent=0
    _
  %s5 = ssub.s32 1, %s3
  %s6 = scalar_select 0, %s5, %s3
  $region1: #{tpu_custom_call.1} parent=0
    #allocation3 [shape = 'u8[24576]{0}', space=vmem, size = 0x6000, scoped, tag = 'input window, operand 0']
    #allocation4 [shape = 's32[2]{0}', space=sflag, size = 0x8, scoped, tag = 'scoped memory for tpu_custom_call.1']
    #allocation5 [shape = 'u8[8192]{0}', space=vmem, size = 0x2000, scoped, tag = 'input window, operand 1']
    #allocation6 [shape = 's32[2]{0}', space=sflag, size = 0x8, scoped, tag = 'scoped memory for tpu_custom_call.1']
    %7 = vsyncpa [#allocation4], 0
    %s8 = scalar_lea.sflag [#allocation4], 1
    %9 = vsyncpa %s8, 0
    %10 = vsyncpa [#allocation6], 0
    %s11 = scalar_lea.sflag [#allocation6], 1
    %12 = vsyncpa %s11, 0
    loop: start=0, step=1, limit=4
    $region2: #{tpu_custom_call.1} parent=1 // loop_pre_header
      _
    $region3: #{tpu_custom_call.1} parent=1 // loop_header
      %s14 = sphi 0, %s18
      %p15 = scmp.ge.s32.totalorder %s14, 4
      %s21 = sphi 0, %s40
      %s22 = sphi 0, %s36
      %s23 = sphi 0, %s32
      %s24 = sphi 0, %s21
      %s25 = sphi 0, %s22
      %s26 = sphi 0, %s23
      %s27 = sphi 0, %s24
      %s28 = sphi 0, %s25
      %s29 = sphi 0, %s26
      %s47 = sphi 0, %s49
      %s50 = sphi 0, %s47
      %s51 = sphi 0, %s50
      %s67 = sphi 0, %s51
      %s77 = sphi 0, %s79
      %s80 = sphi 0, %s77
      %s81 = sphi 0, %s80
      %s97 = sphi 0, %s81
      %s105 = sphi 0, %s107
      %s108 = sphi 0, %s105
      %s109 = sphi 0, %s108
      %s125 = sphi 0, %s109
    $region4: #{tpu_custom_call.1} parent=1 // loop_header_branch
      %17 = sbr.rel (%p15) target = $region8
    $region5: #{tpu_custom_call.1} parent=1 // loop_body
      %s19 = ssub.s32 %s14, 1
      %s20 = ssub.s32 %s14, 2
      %s30 = sadd.s32 1, %s23
      %p31 = scmp.ge.s32.totalorder %s30, 1
      %s32 = scalar_select %p31, 0, %s30
      %s33 = sadd.s32 1, %s22
      %s34 = scalar_select %p31, %s33, %s22
      %p35 = scmp.ge.s32.totalorder %s34, 1
      %s36 = scalar_select %p35, 0, %s34
      %s37 = sadd.s32 1, %s21
      %s38 = scalar_select %p35, %s37, %s21
      %p39 = scmp.ge.s32.totalorder %s38, 2
      %s40 = scalar_select %p39, 0, %s38
      %s41 = sadd.s32 %s22, %s23
      %s42 = sadd.s32 %s36, %s32
      %s43 = ssub.s32 %s21, %s40
      %s44 = ssub.s32 %s41, %s42
      %s45 = sor.u32 %s43, %s44
      %p46 = scmp.eq.s32.totalorder %s45, 0
      %s48 = sadd.s32 %s47, 1
      %s49 = scalar_select %p46, %s47, %s48
      %p52 = pneg %p46
      %p53 = scmp.eq.s32.totalorder %s14, 1
      %p54 = por %p52, %p53
      %p55 = scmp.ne.s32.totalorder %s47, %s50
      %p56 = scmp.eq.s32.totalorder %s14, 0
      %p57 = por %p55, %p56
      %p58 = scmp.ne.s32.totalorder %s47, %s50
      %p59 = scmp.eq.s32.totalorder %s19, 1
      %p60 = por %p58, %p59
      %p61 = scmp.ne.s32.totalorder %s50, %s51
      %p62 = scmp.eq.s32.totalorder %s19, 0
      %p63 = por %p61, %p62
      %p64 = scmp.ne.s32.totalorder %s50, %s51
      %p65 = scmp.eq.s32.totalorder %s20, 1
      %p66 = por %p64, %p65
      %p68 = scmp.ne.s32.totalorder %s51, %s67
      %p69 = scmp.eq.s32.totalorder %s20, 0
      %p70 = por %p68, %p69
      %s71 = sadd.s32 %s22, %s23
      %s72 = sadd.s32 %s36, %s32
      %s73 = ssub.s32 %s21, %s40
      %s74 = ssub.s32 %s71, %s72
      %s75 = sor.u32 %s73, %s74
      %p76 = scmp.eq.s32.totalorder %s75, 0
      %s78 = sadd.s32 %s77, 1
      %s79 = scalar_select %p76, %s77, %s78
      %p82 = pneg %p76
      %p83 = scmp.eq.s32.totalorder %s14, 1
      %p84 = por %p82, %p83
      %p85 = scmp.ne.s32.totalorder %s77, %s80
      %p86 = scmp.eq.s32.totalorder %s14, 0
      %p87 = por %p85, %p86
      %p88 = scmp.ne.s32.totalorder %s77, %s80
      %p89 = scmp.eq.s32.totalorder %s19, 1
      %p90 = por %p88, %p89
      %p91 = scmp.ne.s32.totalorder %s80, %s81
      %p92 = scmp.eq.s32.totalorder %s19, 0
      %p93 = por %p91, %p92
      %p94 = scmp.ne.s32.totalorder %s80, %s81
      %p95 = scmp.eq.s32.totalorder %s20, 1
      %p96 = por %p94, %p95
      %p98 = scmp.ne.s32.totalorder %s81, %s97
      %p99 = scmp.eq.s32.totalorder %s20, 0
      %p100 = por %p98, %p99
      %s101 = ssub.s32 %s21, %s40
      %s102 = ssub.s32 %s22, %s36
      %s103 = sor.u32 %s101, %s102
      %p104 = scmp.eq.s32.totalorder %s103, 0
      %s106 = sadd.s32 %s105, 1
      %s107 = scalar_select %p104, %s105, %s106
      %p110 = pneg %p104
      %p111 = scmp.eq.s32.totalorder %s14, 1
      %p112 = por %p110, %p111
      %p113 = scmp.ne.s32.totalorder %s105, %s108
      %p114 = scmp.eq.s32.totalorder %s14, 0
      %p115 = por %p113, %p114
      %p116 = scmp.ne.s32.totalorder %s105, %s108
      %p117 = scmp.eq.s32.totalorder %s19, 1
      %p118 = por %p116, %p117
      %p119 = scmp.ne.s32.totalorder %s108, %s109
      %p120 = scmp.eq.s32.totalorder %s19, 0
      %p121 = por %p119, %p120
      %p122 = scmp.ne.s32.totalorder %s108, %s109
      %p123 = scmp.eq.s32.totalorder %s20, 1
      %p124 = por %p122, %p123
      %p126 = scmp.ne.s32.totalorder %s109, %s125
      %p127 = scmp.eq.s32.totalorder %s20, 0
      %p128 = por %p126, %p127
      %p129 = scmp.le.s32.totalorder 1, %s14
      %p130 = scmp.lt.s32.totalorder %s14, 3
      %p131 = pnand %p129, %p130
      %p132 = pneg %p131
      // Predicated region
      $region9: #{tpu_custom_call.1} parent=5 // pred_check
        _
      $region10: #{tpu_custom_call.1} parent=5 // pred_check_branch
        %134 = sbr.rel (%p131) target = $region12
      $region11: #{tpu_custom_call.1} parent=5 // pred_region
        %s135 = ssub.s32 %s14, 1
      $region12: #{tpu_custom_call.1} parent=5 // pred_fallthru
        _
      %p136 = scmp.lt.s32.totalorder %s14, 2
      // Predicated region
      $region13: #{tpu_custom_call.1} parent=5 // pred_check
        %p137 = pneg %p136
      $region14: #{tpu_custom_call.1} parent=5 // pred_check_branch
        %139 = sbr.rel (%p137) target = $region16
      $region15: #{tpu_custom_call.1} parent=5 // pred_region
        // Predicated region
        $region17: #{tpu_custom_call.1} parent=15 // pred_check
          %p140 = pneg %p57
        $region18: #{tpu_custom_call.1} parent=15 // pred_check_branch
          %142 = sbr.rel (%p140) target = $region20
        $region19: #{tpu_custom_call.1} parent=15 // pred_region
          %s143 = sand.u32 %s47, 1
          %s144 = scalar_lea.sflag [#allocation4], %s143
          %s145 = sand.u32 %s47, 1
          %s146 = smul.addr %s145, 24
          %s147 = scalar_lea.vmem [#allocation3], %s146
          %s148 = sadd.s32 %s22, %s23
          %s150 = ssub.s32 384, 384
          %151 = vsyncadd %s144, %s150
          %s152 = smul.addr %s21, 3
          %s153 = sadd.s32 %s148, %s152
          %s154 = smul.addr %s153, 128
          %s155 = scalar_lea.hbm %s0, %s154
          %s156 = sshll.u32 %s147, 4
          %s157 = int_to_ptr.vmem [resolvable:$true] %s156
          %162 = dma.hbm_to_vmem [thread:$0]  %s155, 384, %s157, %s144, 128, 128, 8
        $region20: #{tpu_custom_call.1} parent=15 // pred_fallthru
          _
        // Predicated region
        $region21: #{tpu_custom_call.1} parent=15 // pred_check
          %p163 = pneg %p87
        $region22: #{tpu_custom_call.1} parent=15 // pred_check_branch
          %165 = sbr.rel (%p163) target = $region24
        $region23: #{tpu_custom_call.1} parent=15 // pred_region
          %s166 = sand.u32 %s77, 1
          %s167 = scalar_lea.sflag [#allocation6], %s166
          %s168 = sand.u32 %s77, 1
          %s169 = smul.addr %s168, 8
          %s170 = scalar_lea.vmem [#allocation5], %s169
          %s171 = sadd.s32 %s22, %s23
          %s173 = ssub.s32 128, 128
          %174 = vsyncadd %s167, %s173
          %s175 = sadd.s32 %s171, %s21
          %s176 = smul.addr %s175, 128
          %s177 = scalar_lea.hbm %s1, %s176
          %s179 = sshll.u32 %s170, 4
          %s180 = int_to_ptr.vmem [resolvable:$true] %s179
          %182 = dma.hbm_to_vmem [thread:$0]  %s177, 128, %s180, %s167
        $region24: #{tpu_custom_call.1} parent=15 // pred_fallthru
          _
      $region16: #{tpu_custom_call.1} parent=5 // pred_fallthru
        _
      %p183 = scmp.le.s32.totalorder 1, %s14
      %p184 = scmp.lt.s32.totalorder %s14, 3
      %p185 = pnand %p183, %p184
      %p186 = pneg %p185
      // Predicated region
      $region25: #{tpu_custom_call.1} parent=5 // pred_check
        _
      $region26: #{tpu_custom_call.1} parent=5 // pred_check_branch
        %188 = sbr.rel (%p185) target = $region28
      $region27: #{tpu_custom_call.1} parent=5 // pred_region
        %s189 = ssub.s32 %s14, 1
        %s190 = sand.u32 %s50, 1
        %s191 = scalar_lea.sflag [#allocation4], %s190
        %s192 = sand.u32 %s50, 1
        %s193 = smul.addr %s192, 24
        %s194 = scalar_lea.vmem [#allocation3], %s193
        // Predicated region
        $region29: #{tpu_custom_call.1} parent=27 // pred_check
          %p195 = pneg %p63
        $region30: #{tpu_custom_call.1} parent=27 // pred_check_branch
          %197 = sbr.rel (%p195) target = $region32
        $region31: #{tpu_custom_call.1} parent=27 // pred_region
          %198 = dma.done %s191, 384
        $region32: #{tpu_custom_call.1} parent=27 // pred_fallthru
          _
        %s199 = sand.u32 %s80, 1
        %s200 = scalar_lea.sflag [#allocation6], %s199
        %s201 = sand.u32 %s80, 1
        %s202 = smul.addr %s201, 8
        %s203 = scalar_lea.vmem [#allocation5], %s202
        // Predicated region
        $region33: #{tpu_custom_call.1} parent=27 // pred_check
          %p204 = pneg %p93
        $region34: #{tpu_custom_call.1} parent=27 // pred_check_branch
          %206 = sbr.rel (%p204) target = $region36
        $region35: #{tpu_custom_call.1} parent=27 // pred_region
          %207 = dma.done %s200, 128
        $region36: #{tpu_custom_call.1} parent=27 // pred_fallthru
          _
        %s208 = sand.u32 %s50, 1
        %s209 = scalar_lea.sflag [#allocation4], %s208
        %s210 = sand.u32 %s50, 1
        %s211 = smul.addr %s210, 24
        %s212 = scalar_lea.vmem [#allocation3], %s211
        %p213 = pneg %p63
        %p214 = pneg %p60
        %s215 = sand.u32 %s80, 1
        %s216 = scalar_lea.sflag [#allocation6], %s215
        %s217 = sand.u32 %s80, 1
        %s218 = smul.addr %s217, 8
        %s219 = scalar_lea.vmem [#allocation5], %s218
        %p220 = pneg %p93
        %p221 = pneg %p90
        %p222 = pneg %p121
        %p223 = pneg %p118
        %p224 = scmp.lt.s32.totalorder %s24, 1
        %s225 = scalar_select %p224, %s24, 1
        %p226 = scmp.lt.s32.totalorder %s25, 0
        %s227 = scalar_select %p226, %s25, 0
        %s228 = smul.addr %s227, 2
        %s229 = smul.addr %s225, 2
        %s230 = sadd.s32 %s228, %s229
        %s231 = smul.addr %s230, 8
        %s232 = scalar_lea.vmem %s2, %s231
        %s233 = sadd.s32 %s25, %s26
        %s234 = sadd.s32 %s25, %s26
        %p235 = scmp.lt.s32.totalorder %s24, 1
        %s236 = scalar_select %p235, %s24, 1
        %p237 = scmp.lt.s32.totalorder %s25, 0
        %s238 = scalar_select %p237, %s25, 0
        %s239 = smul.addr %s238, 2
        %s240 = smul.addr %s236, 2
        %s241 = sadd.s32 %s239, %s240
        %s242 = smul.addr %s241, 8
        %s243 = scalar_lea.vmem %s2, %s242
        %p244 = scmp.eq.s32.totalorder %s26, 0
        // Predicated region
        $region37: #{tpu_custom_call.1} parent=27 // pred_check
          %p245 = pneg %p244
        $region38: #{tpu_custom_call.1} parent=27 // pred_check_branch
          %247 = sbr.rel (%p245) target = $region40
        $region39: #{tpu_custom_call.1} parent=27 // pred_region
          %248 = vst [vmem:[#allocation2] sm:$0xff] 0.0
          %249 = vst [vmem:[#allocation2 + $0x8] sm:$0xff] 0.0
          %250 = vst [vmem:[#allocation2 + $0x10] sm:$0xff] 0.0
          %251 = vst [vmem:[#allocation2 + $0x18] sm:$0xff] 0.0
          %252 = vst [vmem:[#allocation2 + $0x20] sm:$0xff] 0.0
          %253 = vst [vmem:[#allocation2 + $0x28] sm:$0xff] 0.0
          %254 = vst [vmem:[#allocation2 + $0x30] sm:$0xff] 0.0
          %255 = vst [vmem:[#allocation2 + $0x38] sm:$0xff] 0.0
          %256 = vst [vmem:[#allocation2 + $0x40] sm:$0xff] 0.0
        $region40: #{tpu_custom_call.1} parent=27 // pred_fallthru
          _
        %v257 = vld [vmem:[%s194] sm:$0xff]
        %s258 = scalar_lea.vmem %s194, 8 [#allocation3]
        %v259 = vld [vmem:[%s258] sm:$0xff]
        %s260 = scalar_lea.vmem %s194, 16 [#allocation3]
        %v261 = vld [vmem:[%s260] sm:$0xff]
        %v262 = vld [vmem:[%s203] sm:$0xff]
        %vm263 = vcmp.ne.s32.totalorder %v262, 4294967295
        %v264 = vmax.f32 %v257, %v259
        %v265 = vmax.f32 %v264, %v261
        %v266 = vsub.f32 %v257, %v265
        %v267 = vmul.f32 %v266, 1.442695
        %v268 = vpow.pop %v267
        %v269 = vsub.f32 %v259, %v265
        %v270 = vmul.f32 %v269, 1.442695
        %v271 = vpow.pop %v270
        %v272 = vsub.f32 %v261, %v265
        %v273 = vmul.f32 %v272, 1.442695
        %v274 = vpow.pop %v273
        %v275 = vadd.f32 %v268, %v271
        %v276 = vadd.f32 %v275, %v274
        %v277 = vrcp.pop %v276
        %v278 = vmul.f32 %v276, %v277
        %v279 = vsub.f32 2.0, %v278
        %v280 = vmul.f32 %v277, %v279
        %v281 = vlog2.pop %v276
        %v282 = vmul.f32 %v281, 0.6931472
        %vm283 = vcmp.eq.s32.totalorder %v262, 1
        %vm284 = vcmp.eq.s32.totalorder %v262, 2
        %v285 = vsel %vm283, %v259, %v257
        %v286 = vsel %vm284, %v261, %v285
        %v287 = vsel %vm283, %v271, %v268
        %v288 = vsel %vm284, %v274, %v287
        %v289 = vsel %vm263, 1, 0
        %v290 = vcvt.s32.f32 %v289
        %v291 = vsel %vm283, %v290, 0.0
        %v292 = vsel %vm284, %v290, 0.0
        %v293 = vmul.f32 %v288, %v280
        %v294 = vsub.f32 %v286, %v265
        %v295 = vsub.f32 %v294, %v282
        %v296 = vmul.f32 %v295, %v290
        %v297 = vsub.f32 1.0, %v293
        %v298 = vmul.f32 %v297, %v297
        %v299 = vmul.f32 %v298, %v296
        %v300 = vmul.f32 %v271, %v280
        %v301 = vmul.f32 %v274, %v280
        %v302 = vld [vmem:[#allocation2] sm:$0xff]
        %v303 = vadd.f32 %v296, 0.0
        %v304 = vadd.f32 %v302, %v303
        %305 = vst [vmem:[#allocation2] sm:$0xff] %v304
        %s306 = scalar_lea.vmem [#allocation2], 8
        %v307 = vld [vmem:[%s306] sm:$0xff]
        %v308 = vadd.f32 %v290, 0.0
        %v309 = vadd.f32 %v307, %v308
        %310 = vst [vmem:[%s306] sm:$0xff] %v309
        %s311 = scalar_lea.vmem [#allocation2], 16
        %v312 = vld [vmem:[%s311] sm:$0xff]
        %v313 = vadd.f32 %v299, 0.0
        %v314 = vadd.f32 %v312, %v313
        %315 = vst [vmem:[%s311] sm:$0xff] %v314
        %s316 = scalar_lea.vmem [#allocation2], 24
        %v317 = vld [vmem:[%s316] sm:$0xff]
        %v318 = vmul.f32 %v300, %v291
        %v319 = vadd.f32 %v318, 0.0
        %v320 = vadd.f32 %v317, %v319
        %321 = vst [vmem:[%s316] sm:$0xff] %v320
        %s322 = scalar_lea.vmem [#allocation2], 32
        %v323 = vld [vmem:[%s322] sm:$0xff]
        %v324 = vmul.f32 %v300, %v290
        %v325 = vadd.f32 %v324, 0.0
        %v326 = vadd.f32 %v323, %v325
        %327 = vst [vmem:[%s322] sm:$0xff] %v326
        %s328 = scalar_lea.vmem [#allocation2], 40
        %v329 = vld [vmem:[%s328] sm:$0xff]
        %v330 = vadd.f32 %v291, 0.0
        %v331 = vadd.f32 %v329, %v330
        %332 = vst [vmem:[%s328] sm:$0xff] %v331
        %s333 = scalar_lea.vmem [#allocation2], 48
        %v334 = vld [vmem:[%s333] sm:$0xff]
        %v335 = vmul.f32 %v301, %v292
        %v336 = vadd.f32 %v335, 0.0
        %v337 = vadd.f32 %v334, %v336
        %338 = vst [vmem:[%s333] sm:$0xff] %v337
        %s339 = scalar_lea.vmem [#allocation2], 56
        %v340 = vld [vmem:[%s339] sm:$0xff]
        %v341 = vmul.f32 %v301, %v290
        %v342 = vadd.f32 %v341, 0.0
        %v343 = vadd.f32 %v340, %v342
        %344 = vst [vmem:[%s339] sm:$0xff] %v343
        %s345 = scalar_lea.vmem [#allocation2], 64
        %v346 = vld [vmem:[%s345] sm:$0xff]
        %v347 = vadd.f32 %v292, 0.0
        %v348 = vadd.f32 %v346, %v347
        %349 = vst [vmem:[%s345] sm:$0xff] %v348
        // Predicated region
        $region41: #{tpu_custom_call.1} parent=27 // pred_check
          %p350 = pneg %p244
        $region42: #{tpu_custom_call.1} parent=27 // pred_check_branch
          %352 = sbr.rel (%p350) target = $region44
        $region43: #{tpu_custom_call.1} parent=27 // pred_region
          %v353 = vld [vmem:[#allocation2] sm:$0xff]
          %v354 = vld [vmem:[#allocation2 + $0x8] sm:$0xff]
          %v355 = vld [vmem:[#allocation2 + $0x10] sm:$0xff]
          %v356 = vld [vmem:[#allocation2 + $0x18] sm:$0xff]
          %v357 = vld [vmem:[#allocation2 + $0x20] sm:$0xff]
          %v358 = vld [vmem:[#allocation2 + $0x28] sm:$0xff]
          %v359 = vld [vmem:[#allocation2 + $0x30] sm:$0xff]
          %v360 = vld [vmem:[#allocation2 + $0x38] sm:$0xff]
          %v361 = vld [vmem:[#allocation2 + $0x40] sm:$0xff]
          %v362 = vrot.slane %v353, 4
          %v363 = vadd.f32 %v353, %v362
          %v364 = vrot.slane %v363, 2
          %v365 = vadd.f32 %v363, %v364
          %v366 = vrot.slane %v365, 1
          %v367 = vadd.f32 %v365, %v366
          %v368 = vrot.slane %v354, 4
          %v369 = vadd.f32 %v354, %v368
          %v370 = vrot.slane %v369, 2
          %v371 = vadd.f32 %v369, %v370
          %v372 = vrot.slane %v371, 1
          %v373 = vadd.f32 %v371, %v372
          %v374 = vrot.slane %v355, 4
          %v375 = vadd.f32 %v355, %v374
          %v376 = vrot.slane %v375, 2
          %v377 = vadd.f32 %v375, %v376
          %v378 = vrot.slane %v377, 1
          %v379 = vadd.f32 %v377, %v378
          %v380 = vrot.slane %v356, 4
          %v381 = vadd.f32 %v356, %v380
          %v382 = vrot.slane %v381, 2
          %v383 = vadd.f32 %v381, %v382
          %v384 = vrot.slane %v383, 1
          %v385 = vadd.f32 %v383, %v384
          %v386 = vrot.slane %v357, 4
          %v387 = vadd.f32 %v357, %v386
          %v388 = vrot.slane %v387, 2
          %v389 = vadd.f32 %v387, %v388
          %v390 = vrot.slane %v389, 1
          %v391 = vadd.f32 %v389, %v390
          %v392 = vrot.slane %v358, 4
          %v393 = vadd.f32 %v358, %v392
          %v394 = vrot.slane %v393, 2
          %v395 = vadd.f32 %v393, %v394
          %v396 = vrot.slane %v395, 1
          %v397 = vadd.f32 %v395, %v396
          %v398 = vrot.slane %v359, 4
          %v399 = vadd.f32 %v359, %v398
          %v400 = vrot.slane %v399, 2
          %v401 = vadd.f32 %v399, %v400
          %v402 = vrot.slane %v401, 1
          %v403 = vadd.f32 %v401, %v402
          %v404 = vrot.slane %v360, 4
          %v405 = vadd.f32 %v360, %v404
          %v406 = vrot.slane %v405, 2
          %v407 = vadd.f32 %v405, %v406
          %v408 = vrot.slane %v407, 1
          %v409 = vadd.f32 %v407, %v408
          %v410 = vrot.slane %v361, 4
          %v411 = vadd.f32 %v361, %v410
          %v412 = vrot.slane %v411, 2
          %v413 = vadd.f32 %v411, %v412
          %v414 = vrot.slane %v413, 1
          %v415 = vadd.f32 %v413, %v414
          %vm425 = vcmask 1041409
          %v426 = vsel %vm425, %v373, %v367
          %vm427 = vcmask 1042434
          %v428 = vsel %vm427, %v379, %v426
          %vm429 = vcmask 1043459
          %v430 = vsel %vm429, %v385, %v428
          %vm431 = vcmask 1044484
          %v432 = vsel %vm431, %v391, %v430
          %vm433 = vcmask 1045509
          %v434 = vsel %vm433, %v397, %v432
          %vm435 = vcmask 1046534
          %v436 = vsel %vm435, %v403, %v434
          %vm437 = vcmask 1047559
          %v438 = vsel %vm437, %v409, %v436
          %441 = vst [vmem:[%s243] sm:$0xff] %v438
          %442 = vst [vmem:[%s243 + $0x8] sm:$0x1] %v415
        $region44: #{tpu_custom_call.1} parent=27 // pred_fallthru
          _
        %p443 = scmp.lt.s32.totalorder %s24, 1
        %s444 = scalar_select %p443, %s24, 1
        %p445 = scmp.lt.s32.totalorder %s25, 0
        %s446 = scalar_select %p445, %s25, 0
        %s447 = smul.addr %s446, 2
        %s448 = smul.addr %s444, 2
        %s449 = sadd.s32 %s447, %s448
        %s450 = smul.addr %s449, 8
        %s451 = scalar_lea.vmem %s2, %s450
        // Predicated region
        $region45: #{tpu_custom_call.1} parent=27 // pred_check
          %p452 = pneg %p118
        $region46: #{tpu_custom_call.1} parent=27 // pred_check_branch
          %454 = sbr.rel (%p452) target = $region48
        $region47: #{tpu_custom_call.1} parent=27 // pred_region
          _
        $region48: #{tpu_custom_call.1} parent=27 // pred_fallthru
          _
      $region28: #{tpu_custom_call.1} parent=5 // pred_fallthru
        _
      %p455 = scmp.le.s32.totalorder 2, %s14
      // Predicated region
      $region49: #{tpu_custom_call.1} parent=5 // pred_check
        %p456 = pneg %p455
      $region50: #{tpu_custom_call.1} parent=5 // pred_check_branch
        %458 = sbr.rel (%p456) target = $region52
      $region51: #{tpu_custom_call.1} parent=5 // pred_region
        %s459 = ssub.s32 %s14, 2
        // Predicated region
        $region53: #{tpu_custom_call.1} parent=51 // pred_check
          %p460 = pneg %p124
        $region54: #{tpu_custom_call.1} parent=51 // pred_check_branch
          %462 = sbr.rel (%p460) target = $region56
        $region55: #{tpu_custom_call.1} parent=51 // pred_region
          %p463 = scmp.lt.s32.totalorder %s27, 1
          %s464 = scalar_select %p463, %s27, 1
          %p465 = scmp.lt.s32.totalorder %s28, 0
          %s466 = scalar_select %p465, %s28, 0
          %s467 = smul.addr %s466, 2
          %s468 = smul.addr %s464, 2
          %s469 = sadd.s32 %s467, %s468
          %s470 = smul.addr %s469, 8
          %s471 = scalar_lea.vmem %s2, %s470
        $region56: #{tpu_custom_call.1} parent=51 // pred_fallthru
          _
      $region52: #{tpu_custom_call.1} parent=5 // pred_fallthru
        _
    $region6: #{tpu_custom_call.1} parent=1 // loop_footer
      %s18 = sadd.s32 1, %s14
    $region7: #{tpu_custom_call.1} parent=1 // loop_footer_branch
      %13 = sbr.rel target = $region3
    $region8: #{tpu_custom_call.1} parent=1 // loop_exit
      _
    %472 = vsyncpa [#allocation4], 1
    %s473 = scalar_lea.sflag [#allocation4], 1
    %474 = vsyncpa %s473, 1
    %475 = vsyncpa [#allocation6], 1
    %s476 = scalar_lea.sflag [#allocation6], 1
    %477 = vsyncpa %s476, 1

</llo_original>
